<compile_context>
chip_gen: v6e
topology: v6e:2x2x1
jax: 0.10.0
libtpu: 0.0.40
codegen_flags: <defaults>
</compile_context>

<pallas_src>
import functools

import jax
import jax.numpy as jnp
import numpy as np
from jax.experimental import pallas as pl
from jax.experimental.pallas import tpu as pltpu


def _transform_kernel(points_ref, fm_ref, rand_ref, noise_ref,
                      locs_ref, fm_out_ref, offsets_ref,
                      off_sc,
                      *, scale, full_scale, batch_tile, n_tile, n_steps,
                      num_feat):
    b = pl.program_id(0)
    k = pl.program_id(1)

    # ---- per-batch-tile offset: computed once (k == 0), cached in VMEM ----
    @pl.when(k == 0)
    def _():
        a_full = scale * points_ref[...]                    # (Bt, 3, N)
        m = jnp.min(a_full, axis=2, keepdims=True)          # (Bt, 3, 1)
        M = jnp.max(a_full, axis=2, keepdims=True)          # (Bt, 3, 1)
        d = full_scale - M + m                              # (Bt, 3, 1)
        r1 = rand_ref[:, :, 0:1]                            # uniform [0,1)
        r2 = rand_ref[:, :, 1:2]                            # uniform [0,1)
        offset = (-m
                  + jnp.maximum(d - 0.001, 0.0) * r1        # np.clip(x, 0, None)
                  + jnp.minimum(d + 0.001, 0.0) * r2)       # np.clip(x, None, 0)
        off_sc[...] = offset
        offsets_ref[...] = offset

    offset = off_sc[...]                                    # (Bt, 3, 1)

    # ---- current lane tile of points (points stay resident across k) ----
    if n_steps == 1:
        pts = points_ref[...]
    else:
        start = pl.multiple_of(k * n_tile, n_tile)
        pts = points_ref[:, :, pl.ds(start, n_tile)]
    a = scale * pts + offset                                # (Bt, 3, Nt)

    # ---- per-point validity (sublane min/max over the 3 coords) ----
    per_min = jnp.min(a, axis=1, keepdims=True)             # (Bt, 1, Nt)
    per_max = jnp.max(a, axis=1, keepdims=True)             # (Bt, 1, Nt)
    mask_in = fm_ref[:, num_feat:num_feat + 1, :]           # (Bt, 1, Nt)
    valid = (per_min >= 0.0) & (per_max < full_scale) & (mask_in > 0.0)

    # ---- quantized locations: int coords + batch-id row (two sublane-range
    #      stores, no concat temporary). torch .long() truncates toward zero.
    bid = b * batch_tile + jax.lax.broadcasted_iota(
        jnp.int32, (batch_tile, 1, n_tile), 0)
    locs_ref[:, 0:3, :] = a.astype(jnp.int32)
    locs_ref[:, 3:4, :] = bid

    # ---- fused output: feats(+per-batch noise) rows, updated-mask row ----
    fm_out_ref[:, 0:num_feat, :] = fm_ref[:, 0:num_feat, :] + noise_ref[...]
    fm_out_ref[:, num_feat:num_feat + 1, :] = mask_in * valid.astype(jnp.float32)


def _default_n_tile(N):
    # Prefer >=512-lane tiles (~85%+ of HBM roofline for mem-bound streaming),
    # cap at 8192 so per-step blocks stay well under v5e's 16 MiB scoped VMEM.
    if N % 128 != 0:
        return N
    for cand in (8192, 4096, 2048, 1024, 512, 256, 128):
        if cand <= N and N % cand == 0:
            return cand
    return N


def _pad8(r):
    return ((r + 7) // 8) * 8


def transform(points, feas, masks, rand, noise, scale=20.0, full_scale=4096.0,
              batch_tile=1, n_tile=None, channels_first=False):
    if channels_first:
        # Inputs already lane-dense: points (B,3,N), feas (B,C,N), masks (B,1,N)
        B, _, N = points.shape
        C = feas.shape[1]
        points_t = points[:, :3, :].astype(jnp.float32)
        feas_t = feas.astype(jnp.float32)
        masks_t = jnp.reshape(masks, (B, 1, N)).astype(jnp.float32)
    else:
        B, N, _ = points.shape
        C = feas.shape[-1]
        points_t = jnp.transpose(points[..., :3], (0, 2, 1)).astype(jnp.float32)
        feas_t = jnp.transpose(feas, (0, 2, 1)).astype(jnp.float32)
        masks_t = jnp.reshape(masks, (B, 1, N)).astype(jnp.float32)

    # Fused feature+mask stream: one DMA stream instead of two, and the 1-row
    # mask no longer occupies its own 8x-sublane-padded block.
    fm = jnp.concatenate([feas_t, masks_t], axis=1)          # (B, C+1, N)
    rand_t = jnp.transpose(rand, (0, 2, 1))                  # (B, 3, 2)
    noise_t = jnp.transpose(noise, (0, 2, 1))                # (B, C, 1)

    Bt = int(batch_tile)
    assert B % Bt == 0, "batch_tile must divide batch size"
    Nt = _default_n_tile(N) if n_tile is None else int(n_tile)
    assert N % Nt == 0, "n_tile must divide N"
    assert Nt == N or Nt % 128 == 0, "n_tile must be a multiple of 128 (or == N)"
    n_steps = N // Nt

    kernel = functools.partial(
        _transform_kernel, scale=float(scale), full_scale=float(full_scale),
        batch_tile=Bt, n_tile=Nt, n_steps=n_steps, num_feat=C)

    out_shapes = (
        jax.ShapeDtypeStruct((B, 4, N), jnp.int32),        # locs (xyz + id rows)
        jax.ShapeDtypeStruct((B, C + 1, N), jnp.float32),  # feats(+noise) | mask
        jax.ShapeDtypeStruct((B, 3, 1), jnp.float32),      # offsets
    )
    in_specs = [
        pl.BlockSpec((Bt, 3, N), lambda b, k: (b, 0, 0)),        # resident over k
        pl.BlockSpec((Bt, C + 1, Nt), lambda b, k: (b, 0, k)),
        pl.BlockSpec((Bt, 3, 2), lambda b, k: (b, 0, 0)),
        pl.BlockSpec((Bt, C, 1), lambda b, k: (b, 0, 0)),
    ]
    out_specs = (
        pl.BlockSpec((Bt, 4, Nt), lambda b, k: (b, 0, k)),
        pl.BlockSpec((Bt, C + 1, Nt), lambda b, k: (b, 0, k)),
        pl.BlockSpec((Bt, 3, 1), lambda b, k: (b, 0, 0)),
    )

    # ---- VMEM budget (sublane-padded, double-buffered) and cost hint ----
    f32 = 4
    per_step = (
        2 * Bt * _pad8(3) * N * f32                       # resident points
        + 2 * Bt * _pad8(C + 1) * Nt * f32                # fused feats|mask in
        + 2 * Bt * _pad8(4) * Nt * f32                    # locs out
        + 2 * Bt * _pad8(C + 1) * Nt * f32                # fused feats|mask out
        + 8 * Bt * _pad8(3) * 128 * f32)                  # rand/noise/offsets/scratch
    vmem_limit = int(min(max(2 * per_step, 16 << 20), 64 << 20))

    bytes_accessed = f32 * (B * 3 * N + B * (C + 1) * N + B * 6 + B * C
                            + B * 4 * N + B * (C + 1) * N + B * 3)
    cost = pl.CostEstimate(flops=16 * B * N, transcendentals=0,
                           bytes_accessed=bytes_accessed)

    locs_t, fm_t, off_t = pl.pallas_call(
        kernel,
        out_shape=out_shapes,
        grid_spec=pltpu.PrefetchScalarGridSpec(
            num_scalar_prefetch=0,
            grid=(B // Bt, n_steps),
            in_specs=in_specs,
            out_specs=out_specs,
            scratch_shapes=[pltpu.VMEM((Bt, 3, 1), jnp.float32)],
        ),
        compiler_params=pltpu.CompilerParams(
            dimension_semantics=("parallel", "arbitrary"),
            vmem_limit_bytes=vmem_limit),
        cost_estimate=cost,
    )(points_t, fm, rand_t, noise_t)

    offsets = jnp.reshape(off_t, (B, 3))
    if channels_first:
        return locs_t, fm_t[:, :C, :], fm_t[:, C:, :], offsets

    # ---- back to the caller-facing (B, N, ...) layout ----
    locs = jnp.transpose(locs_t, (0, 2, 1))                 # (B, N, 4)
    feats = jnp.transpose(fm_t[:, :C, :], (0, 2, 1))        # (B, N, C)
    mask_out = jnp.transpose(fm_t[:, C:, :], (0, 2, 1))     # (B, N, 1)
    return locs, feats, mask_out, offsets


def _reference(points, feas, masks, rand, noise, scale, full_scale):
    # Pure-numpy reference of the intended forward semantics (dense form).
    B, N, _ = points.shape
    a = scale * points[..., :3]
    m = a.min(axis=1, keepdims=True)
    M = a.max(axis=1, keepdims=True)
    d = full_scale - M + m
    offset = (-m
              + np.clip(d - 0.001, 0, None) * rand[:, 0:1, :]
              + np.clip(d + 0.001, None, 0) * rand[:, 1:2, :])
    a = a + offset
    valid = (a.min(axis=2) >= 0) & (a.max(axis=2) < full_scale) & (masks[..., 0] > 0)
    batch_id = np.broadcast_to(np.arange(B, dtype=np.int32)[:, None, None], (B, N, 1))
    locs = np.concatenate([a.astype(np.int32), batch_id], axis=2)
    feats = feas + noise
    mask_out = masks * valid[..., None].astype(np.float32)
    return locs, feats, mask_out, offset.reshape(B, 3)


if __name__ == "__main__":
    B, N, C = 2, 512, 3
    scale, full_scale = 20.0, 4096.0

    key = jax.random.PRNGKey(0)
    k1, k2, k3, k4, k5 = jax.random.split(key, 5)

    # points in [0, 100) -> scaled coords in [0, 2000)
    points = jax.random.uniform(k1, (B, N, 3), jnp.float32, 0.0, 100.0)
    feas = jax.random.normal(k2, (B, N, C), jnp.float32)
    masks = (jax.random.uniform(k3, (B, N, 1), jnp.float32) > 0.3).astype(jnp.float32)
    # deterministic stand-ins for np.random.rand(3) (x2) and torch.randn(3)*0.1
    rand = jax.random.uniform(k4, (B, 2, 3), jnp.float32)
    noise = jax.random.normal(k5, (B, 1, C), jnp.float32) * 0.1

    # batch_tile=1, n_tile=128 -> grid (2, 4): exercises pipelining, the
    # resident-points path and the cached per-batch offset.
    locs, feats, mask_out, offsets = jax.block_until_ready(
        transform(points, feas, masks, rand, noise, scale, full_scale,
                  batch_tile=1, n_tile=128))

    # sanity check against numpy reference
    r_locs, r_feats, r_mask, r_off = _reference(
        np.asarray(points), np.asarray(feas), np.asarray(masks),
        np.asarray(rand), np.asarray(noise), scale, full_scale)

    np.testing.assert_allclose(np.asarray(offsets), r_off, rtol=1e-5, atol=1e-4)
    np.testing.assert_allclose(np.asarray(feats), r_feats, rtol=1e-5, atol=1e-5)
    np.testing.assert_allclose(np.asarray(mask_out), r_mask, atol=1e-6)
    # +/-1 tolerance: fp reduction-order differences at int truncation boundaries
    assert np.max(np.abs(np.asarray(locs).astype(np.int64) - r_locs.astype(np.int64))) <= 1

    print("KERNEL_OK")
</pallas_src>

<mosaic_0001>
module attributes {stable_mosaic.version = 11 : i64} {
  func.func @_transform_kernel(%arg0: i32, %arg1: i32, %arg2: memref<1x3x512xf32, #tpu.memory_space<vmem>>, %arg3: memref<1x4x128xf32, #tpu.memory_space<vmem>>, %arg4: memref<1x3x2xf32, #tpu.memory_space<vmem>>, %arg5: memref<1x3x1xf32, #tpu.memory_space<vmem>>, %arg6: memref<1x4x128xi32, #tpu.memory_space<vmem>>, %arg7: memref<1x4x128xf32, #tpu.memory_space<vmem>>, %arg8: memref<1x3x1xf32, #tpu.memory_space<vmem>>, %arg9: memref<1x3x1xf32, #tpu.memory_space<vmem>>) attributes {dimension_semantics = [#tpu.dimension_semantics<parallel>, #tpu.dimension_semantics<arbitrary>], iteration_bounds = array<i64: 2, 4>, scalar_prefetch = 0 : i64, scratch_operands = 1 : i64, tpu.core_type = #tpu.core_type<tc>, window_params = [{transform_indices = @transform_0, window_bounds = array<i64: 1, 3, 512>}, {transform_indices = @transform_1, window_bounds = array<i64: 1, 4, 128>}, {transform_indices = @transform_2, window_bounds = array<i64: 1, 3, 2>}, {transform_indices = @transform_3, window_bounds = array<i64: 1, 3, 1>}, {transform_indices = @transform_4, window_bounds = array<i64: 1, 4, 128>}, {transform_indices = @transform_5, window_bounds = array<i64: 1, 4, 128>}, {transform_indices = @transform_6, window_bounds = array<i64: 1, 3, 1>}]} {
    %c0_i32 = arith.constant 0 : i32
    %0 = arith.cmpi eq, %arg1, %c0_i32 : i32
    %1 = arith.extui %0 : i1 to i32
    %c0_i32_0 = arith.constant 0 : i32
    %2 = arith.cmpi ne, %1, %c0_i32_0 : i32
    scf.if %2 {
      %c0_30 = arith.constant 0 : index
      %c0_31 = arith.constant 0 : index
      %c0_32 = arith.constant 0 : index
      %41 = vector.load %arg2[%c0_30, %c0_31, %c0_32] : memref<1x3x512xf32, #tpu.memory_space<vmem>>, vector<1x3x512xf32>
      %cst_33 = arith.constant 2.000000e+01 : f32
      %42 = vector.broadcast %cst_33 : f32 to vector<1x3x512xf32>
      %43 = arith.mulf %42, %41 : vector<1x3x512xf32>
      %cst_34 = arith.constant dense<0x7F800000> : vector<1x3xf32>
      %44 = vector.multi_reduction <minimumf>, %43, %cst_34 [2] : vector<1x3x512xf32> to vector<1x3xf32>
      %45 = vector.shape_cast %44 : vector<1x3xf32> to vector<1x3x1xf32>
      %cst_35 = arith.constant dense<0xFF800000> : vector<1x3xf32>
      %46 = vector.multi_reduction <maximumf>, %43, %cst_35 [2] : vector<1x3x512xf32> to vector<1x3xf32>
      %47 = vector.shape_cast %46 : vector<1x3xf32> to vector<1x3x1xf32>
      %cst_36 = arith.constant 4.096000e+03 : f32
      %48 = vector.broadcast %cst_36 : f32 to vector<1x3x1xf32>
      %49 = arith.subf %48, %47 : vector<1x3x1xf32>
      %50 = arith.addf %49, %45 : vector<1x3x1xf32>
      %c0_37 = arith.constant 0 : index
      %c0_38 = arith.constant 0 : index
      %c0_39 = arith.constant 0 : index
      %51 = vector.load %arg4[%c0_37, %c0_38, %c0_39] : memref<1x3x2xf32, #tpu.memory_space<vmem>>, vector<1x3x1xf32>
      %c0_40 = arith.constant 0 : index
      %c0_41 = arith.constant 0 : index
      %c1 = arith.constant 1 : index
      %52 = vector.load %arg4[%c0_40, %c0_41, %c1] : memref<1x3x2xf32, #tpu.memory_space<vmem>>, vector<1x3x1xf32>
      %cst_42 = arith.constant 0.000000e+00 : f32
      %53 = vector.broadcast %cst_42 : f32 to vector<1x3x1xf32>
      %54 = arith.subf %53, %45 : vector<1x3x1xf32>
      %cst_43 = arith.constant 1.000000e-03 : f32
      %55 = vector.broadcast %cst_43 : f32 to vector<1x3x1xf32>
      %56 = arith.subf %50, %55 : vector<1x3x1xf32>
      %cst_44 = arith.constant 0.000000e+00 : f32
      %57 = vector.broadcast %cst_44 : f32 to vector<1x3x1xf32>
      %58 = arith.maximumf %56, %57 : vector<1x3x1xf32>
      %59 = arith.mulf %58, %51 : vector<1x3x1xf32>
      %60 = arith.addf %54, %59 : vector<1x3x1xf32>
      %cst_45 = arith.constant 1.000000e-03 : f32
      %61 = vector.broadcast %cst_45 : f32 to vector<1x3x1xf32>
      %62 = arith.addf %50, %61 : vector<1x3x1xf32>
      %cst_46 = arith.constant 0.000000e+00 : f32
      %63 = vector.broadcast %cst_46 : f32 to vector<1x3x1xf32>
      %64 = arith.minimumf %62, %63 : vector<1x3x1xf32>
      %65 = arith.mulf %64, %52 : vector<1x3x1xf32>
      %66 = arith.addf %60, %65 : vector<1x3x1xf32>
      %c0_47 = arith.constant 0 : index
      %c0_48 = arith.constant 0 : index
      %c0_49 = arith.constant 0 : index
      %67 = vector.load %arg9[%c0_47, %c0_48, %c0_49] : memref<1x3x1xf32, #tpu.memory_space<vmem>>, vector<1x3x1xf32>
      tpu.vector_store %arg9[%c0_47, %c0_48, %c0_49], %66 {strides = array<i32>} : memref<1x3x1xf32, #tpu.memory_space<vmem>>, vector<1x3x1xf32>,
      %c0_50 = arith.constant 0 : index
      %c0_51 = arith.constant 0 : index
      %c0_52 = arith.constant 0 : index
      %68 = vector.load %arg8[%c0_50, %c0_51, %c0_52] : memref<1x3x1xf32, #tpu.memory_space<vmem>>, vector<1x3x1xf32>
      tpu.vector_store %arg8[%c0_50, %c0_51, %c0_52], %66 {strides = array<i32>} : memref<1x3x1xf32, #tpu.memory_space<vmem>>, vector<1x3x1xf32>,
    } else {
    }
    %c0 = arith.constant 0 : index
    %c0_1 = arith.constant 0 : index
    %c0_2 = arith.constant 0 : index
    %3 = vector.load %arg9[%c0, %c0_1, %c0_2] : memref<1x3x1xf32, #tpu.memory_space<vmem>>, vector<1x3x1xf32>
    %c128_i32 = arith.constant 128 : i32
    %4 = arith.muli %arg1, %c128_i32 : i32
    %5 = tpu.assume_multiple %4, 128 : i32
    %c0_3 = arith.constant 0 : index
    %c0_4 = arith.constant 0 : index
    %6 = arith.index_cast %5 : i32 to index
    %7 = vector.load %arg2[%c0_3, %c0_4, %6] : memref<1x3x512xf32, #tpu.memory_space<vmem>>, vector<1x3x128xf32>
    %cst = arith.constant 2.000000e+01 : f32
    %8 = vector.broadcast %cst : f32 to vector<1x3x128xf32>
    %9 = arith.mulf %8, %7 : vector<1x3x128xf32>
    %10 = vector.broadcast %3 : vector<1x3x1xf32> to vector<1x3x128xf32>
    %11 = arith.addf %9, %10 : vector<1x3x128xf32>
    %cst_5 = arith.constant dense<0x7F800000> : vector<1x128xf32>
    %12 = vector.multi_reduction <minimumf>, %11, %cst_5 [1] : vector<1x3x128xf32> to vector<1x128xf32>
    %13 = vector.shape_cast %12 : vector<1x128xf32> to vector<1x1x128xf32>
    %cst_6 = arith.constant dense<0xFF800000> : vector<1x128xf32>
    %14 = vector.multi_reduction <maximumf>, %11, %cst_6 [1] : vector<1x3x128xf32> to vector<1x128xf32>
    %15 = vector.shape_cast %14 : vector<1x128xf32> to vector<1x1x128xf32>
    %c0_7 = arith.constant 0 : index
    %c3 = arith.constant 3 : index
    %c0_8 = arith.constant 0 : index
    %16 = vector.load %arg3[%c0_7, %c3, %c0_8] : memref<1x4x128xf32, #tpu.memory_space<vmem>>, vector<1x1x128xf32>
    %cst_9 = arith.constant 0.000000e+00 : f32
    %17 = vector.broadcast %cst_9 : f32 to vector<1x1x128xf32>
    %18 = arith.cmpf oge, %13, %17 : vector<1x1x128xf32>
    %cst_10 = arith.constant 4.096000e+03 : f32
    %19 = vector.broadcast %cst_10 : f32 to vector<1x1x128xf32>
    %20 = arith.cmpf olt, %15, %19 : vector<1x1x128xf32>
    %21 = arith.andi %18, %20 : vector<1x1x128xi1>
    %cst_11 = arith.constant 0.000000e+00 : f32
    %22 = vector.broadcast %cst_11 : f32 to vector<1x1x128xf32>
    %23 = arith.cmpf ogt, %16, %22 : vector<1x1x128xf32>
    %24 = arith.andi %21, %23 : vector<1x1x128xi1>
    %c1_i32 = arith.constant 1 : i32
    %25 = arith.muli %arg0, %c1_i32 : i32
    %26 = tpu.iota {dimensions = array<i32: 0>} : vector<1x1x128xi32>
    %27 = vector.broadcast %25 : i32 to vector<1x1x128xi32>
    %28 = arith.addi %27, %26 : vector<1x1x128xi32>
    %29 = arith.fptosi %11 : vector<1x3x128xf32> to vector<1x3x128xi32>
    %c0_12 = arith.constant 0 : index
    %c0_13 = arith.constant 0 : index
    %c0_14 = arith.constant 0 : index
    %30 = vector.load %arg6[%c0_12, %c0_13, %c0_14] : memref<1x4x128xi32, #tpu.memory_space<vmem>>, vector<1x3x128xi32>
    tpu.vector_store %arg6[%c0_12, %c0_13, %c0_14], %29 {strides = array<i32>} : memref<1x4x128xi32, #tpu.memory_space<vmem>>, vector<1x3x128xi32>,
    %c0_15 = arith.constant 0 : index
    %c3_16 = arith.constant 3 : index
    %c0_17 = arith.constant 0 : index
    %31 = vector.load %arg6[%c0_15, %c3_16, %c0_17] : memref<1x4x128xi32, #tpu.memory_space<vmem>>, vector<1x1x128xi32>
    tpu.vector_store %arg6[%c0_15, %c3_16, %c0_17], %28 {strides = array<i32>} : memref<1x4x128xi32, #tpu.memory_space<vmem>>, vector<1x1x128xi32>,
    %c0_18 = arith.constant 0 : index
    %c0_19 = arith.constant 0 : index
    %c0_20 = arith.constant 0 : index
    %32 = vector.load %arg3[%c0_18, %c0_19, %c0_20] : memref<1x4x128xf32, #tpu.memory_space<vmem>>, vector<1x3x128xf32>
    %c0_21 = arith.constant 0 : index
    %c0_22 = arith.constant 0 : index
    %c0_23 = arith.constant 0 : index
    %33 = vector.load %arg5[%c0_21, %c0_22, %c0_23] : memref<1x3x1xf32, #tpu.memory_space<vmem>>, vector<1x3x1xf32>
    %34 = vector.broadcast %33 : vector<1x3x1xf32> to vector<1x3x128xf32>
    %35 = arith.addf %32, %34 : vector<1x3x128xf32>
    %c0_24 = arith.constant 0 : index
    %c0_25 = arith.constant 0 : index
    %c0_26 = arith.constant 0 : index
    %36 = vector.load %arg7[%c0_24, %c0_25, %c0_26] : memref<1x4x128xf32, #tpu.memory_space<vmem>>, vector<1x3x128xf32>
    tpu.vector_store %arg7[%c0_24, %c0_25, %c0_26], %35 {strides = array<i32>} : memref<1x4x128xf32, #tpu.memory_space<vmem>>, vector<1x3x128xf32>,
    %37 = arith.extui %24 : vector<1x1x128xi1> to vector<1x1x128xi32>
    %38 = arith.sitofp %37 : vector<1x1x128xi32> to vector<1x1x128xf32>
    %39 = arith.mulf %16, %38 : vector<1x1x128xf32>
    %c0_27 = arith.constant 0 : index
    %c3_28 = arith.constant 3 : index
    %c0_29 = arith.constant 0 : index
    %40 = vector.load %arg7[%c0_27, %c3_28, %c0_29] : memref<1x4x128xf32, #tpu.memory_space<vmem>>, vector<1x1x128xf32>
    tpu.vector_store %arg7[%c0_27, %c3_28, %c0_29], %39 {strides = array<i32>} : memref<1x4x128xf32, #tpu.memory_space<vmem>>, vector<1x1x128xf32>,
    return
  }
  func.func @transform_0(%arg0: i32, %arg1: i32) -> (i32, i32, i32) {
    %c0_i32 = arith.constant 0 : i32
    %c0_i32_0 = arith.constant 0 : i32
    %c0_i32_1 = arith.constant 0 : i32
    return %arg0, %c0_i32, %c0_i32_0 : i32, i32, i32
  }
  func.func @transform_1(%arg0: i32, %arg1: i32) -> (i32, i32, i32) {
    %c0_i32 = arith.constant 0 : i32
    %c0_i32_0 = arith.constant 0 : i32
    return %arg0, %c0_i32, %arg1 : i32, i32, i32
  }
  func.func @transform_2(%arg0: i32, %arg1: i32) -> (i32, i32, i32) {
    %c0_i32 = arith.constant 0 : i32
    %c0_i32_0 = arith.constant 0 : i32
    %c0_i32_1 = arith.constant 0 : i32
    return %arg0, %c0_i32, %c0_i32_0 : i32, i32, i32
  }
  func.func @transform_3(%arg0: i32, %arg1: i32) -> (i32, i32, i32) {
    %c0_i32 = arith.constant 0 : i32
    %c0_i32_0 = arith.constant 0 : i32
    %c0_i32_1 = arith.constant 0 : i32
    return %arg0, %c0_i32, %c0_i32_0 : i32, i32, i32
  }
  func.func @transform_4(%arg0: i32, %arg1: i32) -> (i32, i32, i32) {
    %c0_i32 = arith.constant 0 : i32
    %c0_i32_0 = arith.constant 0 : i32
    return %arg0, %c0_i32, %arg1 : i32, i32, i32
  }
  func.func @transform_5(%arg0: i32, %arg1: i32) -> (i32, i32, i32) {
    %c0_i32 = arith.constant 0 : i32
    %c0_i32_0 = arith.constant 0 : i32
    return %arg0, %c0_i32, %arg1 : i32, i32, i32
  }
  func.func @transform_6(%arg0: i32, %arg1: i32) -> (i32, i32, i32) {
    %c0_i32 = arith.constant 0 : i32
    %c0_i32_0 = arith.constant 0 : i32
    %c0_i32_1 = arith.constant 0 : i32
    return %arg0, %c0_i32, %c0_i32_0 : i32, i32, i32
  }
}

</mosaic_0001>

<llo_original>
// kernel: tpu_custom_call.1
$region0: #{tpu_custom_call.1}
  #allocation0 [shape = 'u32[]', space=smem, size = 0x4, offset = 0x4, fixed_abs, tag = 'smem constant byte address 0x4 - core index']
  #allocation1 [shape = 'u32[144,128]{1,0:T(1,128)}', space=vmem, size = 0x12000, scoped, tag = 'internal scratch']
  #allocation2 [shape = 'f32[1,3,1]{2,1,0:T(4,128)}', space=vmem, size = 0x800, scoped, tag = 'scratch operand']
  %s0 = inlined_call_operand.vmem [shape: f32[2,3,512], index: 0, kind: input, shape index: {}]
  %s1 = inlined_call_operand.vmem [shape: f32[2,4,512], index: 1, kind: input, shape index: {}]
  %s2 = inlined_call_operand.vmem [shape: f32[2,3,2], index: 2, kind: input, shape index: {}]
  %s3 = inlined_call_operand.vmem [shape: f32[2,3,1], index: 3, kind: input, shape index: {}]
  %s4 = inlined_call_operand.hbm [shape: s32[2,4,512], index: 4, kind: output, shape index: {0}]
  %s5 = inlined_call_operand.hbm [shape: f32[2,4,512], index: 5, kind: output, shape index: {1}]
  %s6 = inlined_call_operand.vmem [shape: f32[2,3,1], index: 6, kind: output, shape index: {2}]
  %7 = xla_tuple %s4, %s5, %s6
  %s8 = sld [smem:[#allocation0]]
  $region69: #{tpu_custom_call.1} parent=0
    _
  %s10 = ssub.s32 1, %s8
  %s11 = scalar_select 0, %s10, %s8
  $region1: #{tpu_custom_call.1} parent=0
    #allocation3 [shape = 'u8[4096]{0}', space=vmem, size = 0x1000, scoped, tag = 'output window, operand 0']
    #allocation4 [shape = 's32[2]{0}', space=sflag, size = 0x8, scoped, tag = 'scoped memory for tpu_custom_call.1']
    #allocation5 [shape = 'u8[4096]{0}', space=vmem, size = 0x1000, scoped, tag = 'output window, operand 1']
    #allocation6 [shape = 's32[2]{0}', space=sflag, size = 0x8, scoped, tag = 'scoped memory for tpu_custom_call.1']
    %12 = vsyncpa [#allocation4], 0
    %s13 = scalar_lea.sflag [#allocation4], 1
    %14 = vsyncpa %s13, 0
    %15 = vsyncpa [#allocation6], 0
    %s16 = scalar_lea.sflag [#allocation6], 1
    %17 = vsyncpa %s16, 0
    loop: start=0, step=1, limit=10
    $region2: #{tpu_custom_call.1} parent=1 // loop_pre_header
      _
    $region3: #{tpu_custom_call.1} parent=1 // loop_header
      %s19 = sphi 0, %s23
      %p20 = scmp.ge.s32.totalorder %s19, 10
      %s26 = sphi 0, %s38
      %s27 = sphi 0, %s34
      %s28 = sphi 0, %s26
      %s29 = sphi 0, %s27
      %s30 = sphi 0, %s28
      %s31 = sphi 0, %s29
      %s41 = sphi 0, %s43
      %s44 = sphi 0, %s41
      %s45 = sphi 0, %s44
      %s61 = sphi 0, %s45
      %s69 = sphi 0, %s71
      %s72 = sphi 0, %s69
      %s73 = sphi 0, %s72
      %s89 = sphi 0, %s73
      %s95 = sphi 0, %s97
      %s98 = sphi 0, %s95
      %s99 = sphi 0, %s98
      %s115 = sphi 0, %s99
      %s121 = sphi 0, %s123
      %s124 = sphi 0, %s121
      %s125 = sphi 0, %s124
      %s141 = sphi 0, %s125
      %s149 = sphi 0, %s151
      %s152 = sphi 0, %s149
      %s153 = sphi 0, %s152
      %s169 = sphi 0, %s153
      %s177 = sphi 0, %s179
      %s180 = sphi 0, %s177
      %s181 = sphi 0, %s180
      %s197 = sphi 0, %s181
      %s203 = sphi 0, %s205
      %s206 = sphi 0, %s203
      %s207 = sphi 0, %s206
      %s223 = sphi 0, %s207
    $region4: #{tpu_custom_call.1} parent=1 // loop_header_branch
      %22 = sbr.rel (%p20) target = $region8
    $region5: #{tpu_custom_call.1} parent=1 // loop_body
      %s24 = ssub.s32 %s19, 1
      %s25 = ssub.s32 %s19, 2
      %s32 = sadd.s32 1, %s27
      %p33 = scmp.ge.s32.totalorder %s32, 4
      %s34 = scalar_select %p33, 0, %s32
      %s35 = sadd.s32 1, %s26
      %s36 = scalar_select %p33, %s35, %s26
      %p37 = scmp.ge.s32.totalorder %s36, 2
      %s38 = scalar_select %p37, 0, %s36
      %s39 = ssub.s32 %s26, %s38
      %p40 = scmp.eq.s32.totalorder %s39, 0
      %s42 = sadd.s32 %s41, 1
      %s43 = scalar_select %p40, %s41, %s42
      %p46 = pneg %p40
      %p47 = scmp.eq.s32.totalorder %s19, 7
      %p48 = por %p46, %p47
      %p49 = scmp.ne.s32.totalorder %s41, %s44
      %p50 = scmp.eq.s32.totalorder %s19, 0
      %p51 = por %p49, %p50
      %p52 = scmp.ne.s32.totalorder %s41, %s44
      %p53 = scmp.eq.s32.totalorder %s24, 7
      %p54 = por %p52, %p53
      %p55 = scmp.ne.s32.totalorder %s44, %s45
      %p56 = scmp.eq.s32.totalorder %s24, 0
      %p57 = por %p55, %p56
      %p58 = scmp.ne.s32.totalorder %s44, %s45
      %p59 = scmp.eq.s32.totalorder %s25, 7
      %p60 = por %p58, %p59
      %p62 = scmp.ne.s32.totalorder %s45, %s61
      %p63 = scmp.eq.s32.totalorder %s25, 0
      %p64 = por %p62, %p63
      %s65 = ssub.s32 %s26, %s38
      %s66 = ssub.s32 %s27, %s34
      %s67 = sor.u32 %s65, %s66
      %p68 = scmp.eq.s32.totalorder %s67, 0
      %s70 = sadd.s32 %s69, 1
      %s71 = scalar_select %p68, %s69, %s70
      %p74 = pneg %p68
      %p75 = scmp.eq.s32.totalorder %s19, 7
      %p76 = por %p74, %p75
      %p77 = scmp.ne.s32.totalorder %s69, %s72
      %p78 = scmp.eq.s32.totalorder %s19, 0
      %p79 = por %p77, %p78
      %p80 = scmp.ne.s32.totalorder %s69, %s72
      %p81 = scmp.eq.s32.totalorder %s24, 7
      %p82 = por %p80, %p81
      %p83 = scmp.ne.s32.totalorder %s72, %s73
      %p84 = scmp.eq.s32.totalorder %s24, 0
      %p85 = por %p83, %p84
      %p86 = scmp.ne.s32.totalorder %s72, %s73
      %p87 = scmp.eq.s32.totalorder %s25, 7
      %p88 = por %p86, %p87
      %p90 = scmp.ne.s32.totalorder %s73, %s89
      %p91 = scmp.eq.s32.totalorder %s25, 0
      %p92 = por %p90, %p91
      %s93 = ssub.s32 %s26, %s38
      %p94 = scmp.eq.s32.totalorder %s93, 0
      %s96 = sadd.s32 %s95, 1
      %s97 = scalar_select %p94, %s95, %s96
      %p100 = pneg %p94
      %p101 = scmp.eq.s32.totalorder %s19, 7
      %p102 = por %p100, %p101
      %p103 = scmp.ne.s32.totalorder %s95, %s98
      %p104 = scmp.eq.s32.totalorder %s19, 0
      %p105 = por %p103, %p104
      %p106 = scmp.ne.s32.totalorder %s95, %s98
      %p107 = scmp.eq.s32.totalorder %s24, 7
      %p108 = por %p106, %p107
      %p109 = scmp.ne.s32.totalorder %s98, %s99
      %p110 = scmp.eq.s32.totalorder %s24, 0
      %p111 = por %p109, %p110
      %p112 = scmp.ne.s32.totalorder %s98, %s99
      %p113 = scmp.eq.s32.totalorder %s25, 7
      %p114 = por %p112, %p113
      %p116 = scmp.ne.s32.totalorder %s99, %s115
      %p117 = scmp.eq.s32.totalorder %s25, 0
      %p118 = por %p116, %p117
      %s119 = ssub.s32 %s26, %s38
      %p120 = scmp.eq.s32.totalorder %s119, 0
      %s122 = sadd.s32 %s121, 1
      %s123 = scalar_select %p120, %s121, %s122
      %p126 = pneg %p120
      %p127 = scmp.eq.s32.totalorder %s19, 7
      %p128 = por %p126, %p127
      %p129 = scmp.ne.s32.totalorder %s121, %s124
      %p130 = scmp.eq.s32.totalorder %s19, 0
      %p131 = por %p129, %p130
      %p132 = scmp.ne.s32.totalorder %s121, %s124
      %p133 = scmp.eq.s32.totalorder %s24, 7
      %p134 = por %p132, %p133
      %p135 = scmp.ne.s32.totalorder %s124, %s125
      %p136 = scmp.eq.s32.totalorder %s24, 0
      %p137 = por %p135, %p136
      %p138 = scmp.ne.s32.totalorder %s124, %s125
      %p139 = scmp.eq.s32.totalorder %s25, 7
      %p140 = por %p138, %p139
      %p142 = scmp.ne.s32.totalorder %s125, %s141
      %p143 = scmp.eq.s32.totalorder %s25, 0
      %p144 = por %p142, %p143
      %s145 = ssub.s32 %s26, %s38
      %s146 = ssub.s32 %s27, %s34
      %s147 = sor.u32 %s145, %s146
      %p148 = scmp.eq.s32.totalorder %s147, 0
      %s150 = sadd.s32 %s149, 1
      %s151 = scalar_select %p148, %s149, %s150
      %p154 = pneg %p148
      %p155 = scmp.eq.s32.totalorder %s19, 7
      %p156 = por %p154, %p155
      %p157 = scmp.ne.s32.totalorder %s149, %s152
      %p158 = scmp.eq.s32.totalorder %s19, 0
      %p159 = por %p157, %p158
      %p160 = scmp.ne.s32.totalorder %s149, %s152
      %p161 = scmp.eq.s32.totalorder %s24, 7
      %p162 = por %p160, %p161
      %p163 = scmp.ne.s32.totalorder %s152, %s153
      %p164 = scmp.eq.s32.totalorder %s24, 0
      %p165 = por %p163, %p164
      %p166 = scmp.ne.s32.totalorder %s152, %s153
      %p167 = scmp.eq.s32.totalorder %s25, 7
      %p168 = por %p166, %p167
      %p170 = scmp.ne.s32.totalorder %s153, %s169
      %p171 = scmp.eq.s32.totalorder %s25, 0
      %p172 = por %p170, %p171
      %s173 = ssub.s32 %s26, %s38
      %s174 = ssub.s32 %s27, %s34
      %s175 = sor.u32 %s173, %s174
      %p176 = scmp.eq.s32.totalorder %s175, 0
      %s178 = sadd.s32 %s177, 1
      %s179 = scalar_select %p176, %s177, %s178
      %p182 = pneg %p176
      %p183 = scmp.eq.s32.totalorder %s19, 7
      %p184 = por %p182, %p183
      %p185 = scmp.ne.s32.totalorder %s177, %s180
      %p186 = scmp.eq.s32.totalorder %s19, 0
      %p187 = por %p185, %p186
      %p188 = scmp.ne.s32.totalorder %s177, %s180
      %p189 = scmp.eq.s32.totalorder %s24, 7
      %p190 = por %p188, %p189
      %p191 = scmp.ne.s32.totalorder %s180, %s181
      %p192 = scmp.eq.s32.totalorder %s24, 0
      %p193 = por %p191, %p192
      %p194 = scmp.ne.s32.totalorder %s180, %s181
      %p195 = scmp.eq.s32.totalorder %s25, 7
      %p196 = por %p194, %p195
      %p198 = scmp.ne.s32.totalorder %s181, %s197
      %p199 = scmp.eq.s32.totalorder %s25, 0
      %p200 = por %p198, %p199
      %s201 = ssub.s32 %s26, %s38
      %p202 = scmp.eq.s32.totalorder %s201, 0
      %s204 = sadd.s32 %s203, 1
      %s205 = scalar_select %p202, %s203, %s204
      %p208 = pneg %p202
      %p209 = scmp.eq.s32.totalorder %s19, 7
      %p210 = por %p208, %p209
      %p211 = scmp.ne.s32.totalorder %s203, %s206
      %p212 = scmp.eq.s32.totalorder %s19, 0
      %p213 = por %p211, %p212
      %p214 = scmp.ne.s32.totalorder %s203, %s206
      %p215 = scmp.eq.s32.totalorder %s24, 7
      %p216 = por %p214, %p215
      %p217 = scmp.ne.s32.totalorder %s206, %s207
      %p218 = scmp.eq.s32.totalorder %s24, 0
      %p219 = por %p217, %p218
      %p220 = scmp.ne.s32.totalorder %s206, %s207
      %p221 = scmp.eq.s32.totalorder %s25, 7
      %p222 = por %p220, %p221
      %p224 = scmp.ne.s32.totalorder %s207, %s223
      %p225 = scmp.eq.s32.totalorder %s25, 0
      %p226 = por %p224, %p225
      %p227 = scmp.le.s32.totalorder 1, %s19
      %p228 = scmp.lt.s32.totalorder %s19, 9
      %p229 = pnand %p227, %p228
      %p230 = pneg %p229
      // Predicated region
      $region9: #{tpu_custom_call.1} parent=5 // pred_check
        _
      $region10: #{tpu_custom_call.1} parent=5 // pred_check_branch
        %232 = sbr.rel (%p229) target = $region12
      $region11: #{tpu_custom_call.1} parent=5 // pred_region
        %s233 = ssub.s32 %s19, 1
      $region12: #{tpu_custom_call.1} parent=5 // pred_fallthru
        _
      %p234 = scmp.lt.s32.totalorder %s19, 8
      // Predicated region
      $region13: #{tpu_custom_call.1} parent=5 // pred_check
        %p235 = pneg %p234
      $region14: #{tpu_custom_call.1} parent=5 // pred_check_branch
        %237 = sbr.rel (%p235) target = $region16
      $region15: #{tpu_custom_call.1} parent=5 // pred_region
        // Predicated region
        $region17: #{tpu_custom_call.1} parent=15 // pred_check
          %p238 = pneg %p51
        $region18: #{tpu_custom_call.1} parent=15 // pred_check_branch
          %240 = sbr.rel (%p238) target = $region20
        $region19: #{tpu_custom_call.1} parent=15 // pred_region
          %p241 = scmp.lt.s32.totalorder %s26, 1
          %s242 = scalar_select %p241, %s26, 1
          %s243 = smul.addr %s242, 4
          %s244 = smul.addr %s243, 4
          %s245 = scalar_lea.vmem %s0, %s244
        $region20: #{tpu_custom_call.1} parent=15 // pred_fallthru
          _
        // Predicated region
        $region21: #{tpu_custom_call.1} parent=15 // pred_check
          %p246 = pneg %p79
        $region22: #{tpu_custom_call.1} parent=15 // pred_check_branch
          %248 = sbr.rel (%p246) target = $region24
        $region23: #{tpu_custom_call.1} parent=15 // pred_region
          %p249 = scmp.lt.s32.totalorder %s26, 1
          %s250 = scalar_select %p249, %s26, 1
          %p251 = scmp.lt.s32.totalorder %s27, 3
          %s252 = scalar_select %p251, %s27, 3
          %s253 = smul.addr %s250, 4
          %s254 = sadd.s32 %s252, %s253
          %s255 = smul.addr %s254, 4
          %s256 = scalar_lea.vmem %s1, %s255
        $region24: #{tpu_custom_call.1} parent=15 // pred_fallthru
          _
        // Predicated region
        $region25: #{tpu_custom_call.1} parent=15 // pred_check
          %p257 = pneg %p105
        $region26: #{tpu_custom_call.1} parent=15 // pred_check_branch
          %259 = sbr.rel (%p257) target = $region28
        $region27: #{tpu_custom_call.1} parent=15 // pred_region
          %p260 = scmp.lt.s32.totalorder %s26, 1
          %s261 = scalar_select %p260, %s26, 1
          %s262 = smul.addr %s261, 4
          %s263 = scalar_lea.vmem %s2, %s262
        $region28: #{tpu_custom_call.1} parent=15 // pred_fallthru
          _
        // Predicated region
        $region29: #{tpu_custom_call.1} parent=15 // pred_check
          %p264 = pneg %p131
        $region30: #{tpu_custom_call.1} parent=15 // pred_check_branch
          %266 = sbr.rel (%p264) target = $region32
        $region31: #{tpu_custom_call.1} parent=15 // pred_region
          %p267 = scmp.lt.s32.totalorder %s26, 1
          %s268 = scalar_select %p267, %s26, 1
          %s269 = smul.addr %s268, 4
          %s270 = scalar_lea.vmem %s3, %s269
        $region32: #{tpu_custom_call.1} parent=15 // pred_fallthru
          _
      $region16: #{tpu_custom_call.1} parent=5 // pred_fallthru
        _
      %p271 = scmp.le.s32.totalorder 1, %s19
      %p272 = scmp.lt.s32.totalorder %s19, 9
      %p273 = pnand %p271, %p272
      %p274 = pneg %p273
      // Predicated region
      $region33: #{tpu_custom_call.1} parent=5 // pred_check
        _
      $region34: #{tpu_custom_call.1} parent=5 // pred_check_branch
        %276 = sbr.rel (%p273) target = $region36
      $region35: #{tpu_custom_call.1} parent=5 // pred_region
        %s277 = ssub.s32 %s19, 1
        %p278 = scmp.lt.s32.totalorder %s28, 1
        %s279 = scalar_select %p278, %s28, 1
        %s280 = smul.addr %s279, 4
        %s281 = smul.addr %s280, 4
        %s282 = scalar_lea.vmem %s0, %s281
        %p283 = pneg %p57
        %p284 = pneg %p54
        %p285 = scmp.lt.s32.totalorder %s28, 1
        %s286 = scalar_select %p285, %s28, 1
        %p287 = scmp.lt.s32.totalorder %s29, 3
        %s288 = scalar_select %p287, %s29, 3
        %s289 = smul.addr %s286, 4
        %s290 = sadd.s32 %s288, %s289
        %s291 = smul.addr %s290, 4
        %s292 = scalar_lea.vmem %s1, %s291
        %p293 = pneg %p85
        %p294 = pneg %p82
        %p295 = scmp.lt.s32.totalorder %s28, 1
        %s296 = scalar_select %p295, %s28, 1
        %s297 = smul.addr %s296, 4
        %s298 = scalar_lea.vmem %s2, %s297
        %p299 = pneg %p111
        %p300 = pneg %p108
        %p301 = scmp.lt.s32.totalorder %s28, 1
        %s302 = scalar_select %p301, %s28, 1
        %s303 = smul.addr %s302, 4
        %s304 = scalar_lea.vmem %s3, %s303
        %p305 = pneg %p137
        %p306 = pneg %p134
        %p307 = pneg %p165
        %p308 = pneg %p162
        %s309 = sand.u32 %s152, 1
        %s310 = scalar_lea.sflag [#allocation4], %s309
        %s311 = sand.u32 %s152, 1
        %s312 = smul.addr %s311, 4
        %s313 = scalar_lea.vmem [#allocation3], %s312
        %p314 = pneg %p193
        %p315 = pneg %p190
        %s316 = sand.u32 %s180, 1
        %s317 = scalar_lea.sflag [#allocation6], %s316
        %s318 = sand.u32 %s180, 1
        %s319 = smul.addr %s318, 4
        %s320 = scalar_lea.vmem [#allocation5], %s319
        %p321 = pneg %p219
        %p322 = pneg %p216
        %p323 = scmp.lt.s32.totalorder %s28, 1
        %s324 = scalar_select %p323, %s28, 1
        %s325 = smul.addr %s324, 4
        %s326 = scalar_lea.vmem %s6, %s325
        %p327 = scmp.lt.s32.totalorder %s28, 1
        %s328 = scalar_select %p327, %s28, 1
        %s329 = smul.addr %s328, 4
        %s330 = smul.addr %s329, 4
        %s331 = scalar_lea.vmem %s0, %s330
        %p332 = scmp.lt.s32.totalorder %s28, 1
        %s333 = scalar_select %p332, %s28, 1
        %p334 = scmp.lt.s32.totalorder %s29, 3
        %s335 = scalar_select %p334, %s29, 3
        %s336 = smul.addr %s333, 4
        %s337 = sadd.s32 %s335, %s336
        %s338 = smul.addr %s337, 4
        %s339 = scalar_lea.vmem %s1, %s338
        %p340 = scmp.lt.s32.totalorder %s28, 1
        %s341 = scalar_select %p340, %s28, 1
        %s342 = smul.addr %s341, 4
        %s343 = scalar_lea.vmem %s2, %s342
        %p344 = scmp.lt.s32.totalorder %s28, 1
        %s345 = scalar_select %p344, %s28, 1
        %s346 = smul.addr %s345, 4
        %s347 = scalar_lea.vmem %s3, %s346
        %p348 = scmp.lt.s32.totalorder %s28, 1
        %s349 = scalar_select %p348, %s28, 1
        %s350 = smul.addr %s349, 4
        %s351 = scalar_lea.vmem %s6, %s350
        %p352 = scmp.eq.s32.totalorder %s29, 0
        // Predicated region
        $region37: #{tpu_custom_call.1} parent=35 // pred_check
          %p353 = pneg %p352
        $region38: #{tpu_custom_call.1} parent=35 // pred_check_branch
          %355 = sbr.rel (%p353) target = $region40
        $region39: #{tpu_custom_call.1} parent=35 // pred_region
          %v356 = vld [vmem:[%s331] sm:$0x77]
          %v357 = vld [vmem:[%s331 + $0x8] sm:$0x77]
          %v358 = vmul.f32 %v356, 20.0
          %v359 = vmul.f32 %v357, 20.0
          %v362 = vcombine.high %v358, %v358
          %v363 = vcombine.high %v359, %v359
          %vm366 = vcmask 1042432
          %v367 = vsel %vm366, %v358, inf
          %v368 = vsel %vm366, %v362, inf
          %v369 = vsel %vm366, %v359, inf
          %v370 = vsel %vm366, %v363, inf
          %v371 = vmin.f32 %v367, %v368
          %v372 = vmin.f32 %v369, %v370
          %v373 = vmin.f32 %v371, %v372
          %374 = vmin.xlane.f32.xlu0 %v373
          %v375 = vpop.xlane.xlu0 %374
          %v376 = vsel %vm366, %v358, -inf
          %v377 = vsel %vm366, %v362, -inf
          %v378 = vsel %vm366, %v359, -inf
          %v379 = vsel %vm366, %v363, -inf
          %v380 = vmax.f32 %v376, %v377
          %v381 = vmax.f32 %v378, %v379
          %v382 = vmax.f32 %v380, %v381
          %383 = vmax.xlane.f32.xlu0 %v382
          %v384 = vpop.xlane.xlu0 %383
          %v385 = vsub.f32 4096.0, %v384
          %v386 = vadd.f32 %v385, %v375
          %v387 = vld [vmem:[%s343] sm:$0x7]
          %v388 = vsub.f32 0.0, %v375
          %v389 = vsub.f32 %v386, 0.001
          %v390 = vmax.f32 %v389, 0.0
          %v391 = vmul.f32 %v390, %v387
          %v392 = vadd.f32 %v388, %v391
          %v393 = vadd.f32 %v386, 0.001
          %v394 = vmin.f32 %v393, 0.0
          %v395 = vmul.f32 %v394, %v387
          %397 = vrot.lane.b32.xlu0 %v395, 127
          %v398 = vpop.permute.xlu0 %397
          %v400 = vadd.f32 %v392, %v398
          %vm401 = vcmask 2048
          %402 = vst.msk [vmem:[#allocation2] sm:$0x7] %vm401, %v400
          %403 = vst.msk [vmem:[%s351] sm:$0x7] %vm401, %v400
        $region40: #{tpu_custom_call.1} parent=35 // pred_fallthru
          _
        %v404 = vld [vmem:[#allocation2] sm:$0x7]
        %s405 = smul.u32 %s29, 128
        %s406 = sshra.s32 %s405, 7
        %s407 = sand.u32 %s405, 127
        %s408 = smul.addr %s406, 4
        %s409 = scalar_lea.vmem %s331, %s408
        %v410 = vld [vmem:[%s409] sm:$0x7]
        %v411 = vmul.f32 %v410, 20.0
        %413 = vset.pattern.permute.xlu0 0
        %414 = vperm.xlu0 %413, %v404
        %v415 = vpop.permute.xlu0 %414
        %v417 = vadd.f32 %v411, %v415
        %vm418 = vcmask 1042432
        %v419 = vsel %vm418, %v417, inf
        %v420 = vrot.slane %v419, 4
        %v421 = vmin.f32 %v419, %v420
        %v422 = vrot.slane %v421, 2
        %v423 = vmin.f32 %v421, %v422
        %v424 = vrot.slane %v423, 1
        %v425 = vmin.f32 %v423, %v424
        %v426 = vsel %vm418, %v417, -inf
        %v427 = vrot.slane %v426, 4
        %v428 = vmax.f32 %v426, %v427
        %v429 = vrot.slane %v428, 2
        %v430 = vmax.f32 %v428, %v429
        %v431 = vrot.slane %v430, 1
        %v432 = vmax.f32 %v430, %v431
        %v433 = vld [vmem:[%s339 + $0x3] sm:$0x1]
        %vm434 = vcmp.ge.f32.partialorder %v425, 0.0
        %vm435 = vcmp.lt.f32.partialorder %v432, 4096.0
        %vm436 = vmand %vm434, %vm435
        %vm437 = vcmp.gt.f32.partialorder %v433, 0.0
        %vm438 = vmand %vm436, %vm437
        %v439 = vstv %s28
        %v440 = vcvt.f32.s32.to.zero.pseudo %v417
        %441 = vst [vmem:[%s313] sm:$0x7] %v440
        %442 = vst [vmem:[%s313 + $0x3] sm:$0x1] %v439
        %v443 = vld [vmem:[%s339] sm:$0x7]
        %v444 = vld [vmem:[%s347] sm:$0x7]
        %446 = vset.pattern.permute.xlu0 0
        %447 = vperm.xlu0 %446, %v444
        %v448 = vpop.permute.xlu0 %447
        %v450 = vadd.f32 %v443, %v448
        %451 = vst [vmem:[%s320] sm:$0x7] %v450
        %v452 = vsel %vm438, 1, 0
        %v453 = vcvt.s32.f32 %v452
        %v454 = vmul.f32 %v433, %v453
        %455 = vst [vmem:[%s320 + $0x3] sm:$0x1] %v454
        %s456 = sand.u32 %s152, 1
        %s457 = scalar_lea.sflag [#allocation4], %s456
        %s458 = sand.u32 %s152, 1
        %s459 = smul.addr %s458, 4
        %s460 = scalar_lea.vmem [#allocation3], %s459
        %s461 = sand.u32 %s180, 1
        %s462 = scalar_lea.sflag [#allocation6], %s461
        %s463 = sand.u32 %s180, 1
        %s464 = smul.addr %s463, 4
        %s465 = scalar_lea.vmem [#allocation5], %s464
        %p466 = scmp.lt.s32.totalorder %s28, 1
        %s467 = scalar_select %p466, %s28, 1
        %s468 = smul.addr %s467, 4
        %s469 = scalar_lea.vmem %s6, %s468
        // Predicated region
        $region41: #{tpu_custom_call.1} parent=35 // pred_check
          %p470 = pneg %p162
        $region42: #{tpu_custom_call.1} parent=35 // pred_check_branch
          %472 = sbr.rel (%p470) target = $region44
        $region43: #{tpu_custom_call.1} parent=35 // pred_region
          %s474 = ssub.s32 64, 64
          %475 = vsyncadd %s457, %s474
          %s476 = smul.addr %s28, 4
          %s477 = sadd.s32 %s29, %s476
          %s478 = smul.addr %s477, 64
          %s479 = scalar_lea.hbm %s4, %s478
          %s481 = sshll.u32 %s460, 4
          %s482 = int_to_ptr.vmem [resolvable:$true] %s481
          %484 = dma.vmem_to_hbm [thread:$0]  %s482, 64, %s479, %s457
        $region44: #{tpu_custom_call.1} parent=35 // pred_fallthru
          _
        // Predicated region
        $region45: #{tpu_custom_call.1} parent=35 // pred_check
          %p485 = pneg %p190
        $region46: #{tpu_custom_call.1} parent=35 // pred_check_branch
          %487 = sbr.rel (%p485) target = $region48
        $region47: #{tpu_custom_call.1} parent=35 // pred_region
          %s489 = ssub.s32 64, 64
          %490 = vsyncadd %s462, %s489
          %s491 = smul.addr %s28, 4
          %s492 = sadd.s32 %s29, %s491
          %s493 = smul.addr %s492, 64
          %s494 = scalar_lea.hbm %s5, %s493
          %s496 = sshll.u32 %s465, 4
          %s497 = int_to_ptr.vmem [resolvable:$true] %s496
          %499 = dma.vmem_to_hbm [thread:$0]  %s497, 64, %s494, %s462
        $region48: #{tpu_custom_call.1} parent=35 // pred_fallthru
          _
        // Predicated region
        $region49: #{tpu_custom_call.1} parent=35 // pred_check
          %p500 = pneg %p216
        $region50: #{tpu_custom_call.1} parent=35 // pred_check_branch
          %502 = sbr.rel (%p500) target = $region52
        $region51: #{tpu_custom_call.1} parent=35 // pred_region
          _
        $region52: #{tpu_custom_call.1} parent=35 // pred_fallthru
          _
      $region36: #{tpu_custom_call.1} parent=5 // pred_fallthru
        _
      %p503 = scmp.le.s32.totalorder 2, %s19
      // Predicated region
      $region53: #{tpu_custom_call.1} parent=5 // pred_check
        %p504 = pneg %p503
      $region54: #{tpu_custom_call.1} parent=5 // pred_check_branch
        %506 = sbr.rel (%p504) target = $region56
      $region55: #{tpu_custom_call.1} parent=5 // pred_region
        %s507 = ssub.s32 %s19, 2
        // Predicated region
        $region57: #{tpu_custom_call.1} parent=55 // pred_check
          %p508 = pneg %p168
        $region58: #{tpu_custom_call.1} parent=55 // pred_check_branch
          %510 = sbr.rel (%p508) target = $region60
        $region59: #{tpu_custom_call.1} parent=55 // pred_region
          %s511 = sand.u32 %s153, 1
          %s512 = scalar_lea.sflag [#allocation4], %s511
          %s513 = sand.u32 %s153, 1
          %s514 = smul.addr %s513, 4
          %s515 = scalar_lea.vmem [#allocation3], %s514
          %516 = dma.done %s512, 64
        $region60: #{tpu_custom_call.1} parent=55 // pred_fallthru
          _
        // Predicated region
        $region61: #{tpu_custom_call.1} parent=55 // pred_check
          %p517 = pneg %p196
        $region62: #{tpu_custom_call.1} parent=55 // pred_check_branch
          %519 = sbr.rel (%p517) target = $region64
        $region63: #{tpu_custom_call.1} parent=55 // pred_region
          %s520 = sand.u32 %s181, 1
          %s521 = scalar_lea.sflag [#allocation6], %s520
          %s522 = sand.u32 %s181, 1
          %s523 = smul.addr %s522, 4
          %s524 = scalar_lea.vmem [#allocation5], %s523
          %525 = dma.done %s521, 64
        $region64: #{tpu_custom_call.1} parent=55 // pred_fallthru
          _
        // Predicated region
        $region65: #{tpu_custom_call.1} parent=55 // pred_check
          %p526 = pneg %p222
        $region66: #{tpu_custom_call.1} parent=55 // pred_check_branch
          %528 = sbr.rel (%p526) target = $region68
        $region67: #{tpu_custom_call.1} parent=55 // pred_region
          %p529 = scmp.lt.s32.totalorder %s30, 1
          %s530 = scalar_select %p529, %s30, 1
          %s531 = smul.addr %s530, 4
          %s532 = scalar_lea.vmem %s6, %s531
        $region68: #{tpu_custom_call.1} parent=55 // pred_fallthru
          _
      $region56: #{tpu_custom_call.1} parent=5 // pred_fallthru
        _
    $region6: #{tpu_custom_call.1} parent=1 // loop_footer
      %s23 = sadd.s32 1, %s19
    $region7: #{tpu_custom_call.1} parent=1 // loop_footer_branch
      %18 = sbr.rel target = $region3
    $region8: #{tpu_custom_call.1} parent=1 // loop_exit
      _
    %533 = vsyncpa [#allocation4], 1
    %s534 = scalar_lea.sflag [#allocation4], 1
    %535 = vsyncpa %s534, 1
    %536 = vsyncpa [#allocation6], 1
    %s537 = scalar_lea.sflag [#allocation6], 1
    %538 = vsyncpa %s537, 1

</llo_original>
